<compile_context>
chip_gen: v7x
topology: tpu7x:2x2x1
jax: 0.10.0
libtpu: 0.0.40
codegen_flags: <defaults>
</compile_context>

<pallas_src>
import functools

import jax
import jax.numpy as jnp
from jax.experimental import pallas as pl
from jax.experimental.pallas import tpu as pltpu

_LANES = 128


def _loss_kernel(s_ref, o_ref, *scratch, use_max_margin, c, inv_n, n_valid,
                 tm, grid_m, need_mask):
    i = pl.program_id(0)

    x = s_ref[...].astype(jnp.float32)                      # (tm, 128)

    if use_max_margin:
        loss = jnp.maximum(x + c, 0.0)
        sign = -1.0
    else:
        # BCEWithLogits vs target=1 == softplus(-x), numerically stable form.
        loss = jnp.maximum(-x, 0.0) + jnp.log1p(jnp.exp(-jnp.abs(x)))
        sign = 1.0

    def tail_mask(l):
        # Flat element index of every lane of the *last* block; zero out
        # wrapper padding and out-of-bounds block rows (may hold garbage/NaN;
        # jnp.where selects, so it never reaches the sum).
        row = jax.lax.broadcasted_iota(jnp.int32, l.shape, 0)
        lane = jax.lax.broadcasted_iota(jnp.int32, l.shape, 1)
        flat = (grid_m - 1) * (tm * _LANES) + row * _LANES + lane
        return jnp.where(flat < n_valid, l, 0.0)

    if grid_m == 1:
        # Single block: reduce and write the scalar directly (no accumulator).
        if need_mask:
            loss = tail_mask(loss)
        o_ref[0, 0] = (sign * inv_n) * jnp.sum(loss)
        return

    acc_ref, = scratch                                      # (8, 128) f32

    @pl.when(i == 0)
    def _():
        acc_ref[...] = jnp.zeros_like(acc_ref)

    def accumulate(l):
        # Splitting only the leading dim is layout-free; axis-0 sum is plain
        # vreg adds on the VPU (no cross-lane traffic in steady state).
        acc_ref[...] += l.reshape(tm // 8, 8, _LANES).sum(axis=0)

    if need_mask:
        @pl.when(i < grid_m - 1)
        def _():
            accumulate(loss)                                # unmasked steady state

        @pl.when(i == grid_m - 1)
        def _():
            accumulate(tail_mask(loss))                     # masked tail only
    else:
        accumulate(loss)

    @pl.when(i == grid_m - 1)
    def _():
        o_ref[0, 0] = (sign * inv_n) * jnp.sum(acc_ref[...])


def binary_score_objective(scores, *, use_max_margin=True, c=1.0,
                           block_bytes=8 * 1024 * 1024):
    """Pallas implementation of BinaryScoreObjective.forward (returns f32 scalar)."""
    # Lane-dense re-layout: flatten everything and view as (rows, 128).
    flat = scores.reshape(-1)
    n = int(flat.shape[0])
    if n == 0:
        raise ValueError("scores must be non-empty")
    itemsize = int(jnp.dtype(scores.dtype).itemsize)

    rows = int(pl.cdiv(n, _LANES))
    padded = rows * _LANES
    if padded != n:
        # Small copy; only happens when the element count isn't lane-aligned.
        flat = jnp.pad(flat, (0, padded - n))
    x2d = flat.reshape(rows, _LANES)

    # Largest row tile (multiple of 8) under the per-block VMEM budget.
    rows_budget = max(8, (int(block_bytes) // (_LANES * itemsize)) // 8 * 8)
    if rows <= rows_budget:
        tm = rows                      # single block == full array dims (any rows)
        grid_m = 1
    else:
        tm = int(rows_budget)          # multiple of 8; tail handled by flat mask
        grid_m = int(pl.cdiv(rows, tm))

    need_mask = (n != grid_m * tm * _LANES)

    kernel = functools.partial(
        _loss_kernel,
        use_max_margin=bool(use_max_margin),
        c=float(c),
        inv_n=float(1.0 / n),
        n_valid=int(n),
        tm=int(tm),
        grid_m=int(grid_m),
        need_mask=bool(need_mask),
    )

    # No accumulator scratch on the single-block fast path.
    scratch = [] if grid_m == 1 else [pltpu.VMEM((8, _LANES), jnp.float32)]

    tile_bytes = tm * _LANES * itemsize
    vmem_limit = int(min(64 * 1024 * 1024,
                         max(32 * 1024 * 1024, 2 * tile_bytes + 2 * 1024 * 1024)))

    cost = pl.CostEstimate(
        flops=(4 if use_max_margin else 6) * n,
        transcendentals=(0 if use_max_margin else 2 * n),
        bytes_accessed=n * itemsize + 4,
    )

    out = pl.pallas_call(
        kernel,
        out_shape=jax.ShapeDtypeStruct((1, 1), jnp.float32),
        grid=(grid_m,),
        in_specs=[pl.BlockSpec((tm, _LANES), lambda i: (i, 0))],
        out_specs=pl.BlockSpec(memory_space=pltpu.MemorySpace.SMEM),
        scratch_shapes=scratch,
        compiler_params=pltpu.CompilerParams(
            dimension_semantics=("arbitrary",),
            vmem_limit_bytes=vmem_limit),
        cost_estimate=cost,
    )(x2d)
    return out[0, 0]


# ----------------------------- references -----------------------------------

def _ref_max_margin(x, c):
    x = x.astype(jnp.float32)
    return -jnp.mean(jnp.maximum(x + c, 0.0))


def _ref_bce(x):
    x = x.astype(jnp.float32)
    return jnp.mean(jnp.maximum(-x, 0.0) + jnp.log1p(jnp.exp(-jnp.abs(x))))


if __name__ == "__main__":
    key = jax.random.PRNGKey(0)
    c = 1.0

    # --- small, lane-aligned 2-D case (single-block fast path) ---
    scores = jax.random.normal(key, (16, 256), dtype=jnp.float32)
    loss_mm = jax.block_until_ready(
        binary_score_objective(scores, use_max_margin=True, c=c))
    assert jnp.allclose(loss_mm, _ref_max_margin(scores, c), atol=1e-5, rtol=1e-5)
    loss_bce = jax.block_until_ready(
        binary_score_objective(scores, use_max_margin=False, c=c))
    assert jnp.allclose(loss_bce, _ref_bce(scores), atol=1e-5, rtol=1e-5)

    # --- bf16 input (half the HBM bytes), math stays in f32 ---
    scores_bf16 = scores.astype(jnp.bfloat16)
    loss_bf16 = jax.block_until_ready(
        binary_score_objective(scores_bf16, use_max_margin=True, c=c))
    assert jnp.allclose(loss_bf16, _ref_max_margin(scores_bf16, c),
                        atol=1e-4, rtol=1e-4)

    # --- narrow (B, 1) scores: lane-dense relayout + flat-tail mask ---
    scores_b1 = jax.random.normal(jax.random.PRNGKey(1), (20, 1), dtype=jnp.float32)
    for mm in (True, False):
        got = jax.block_until_ready(
            binary_score_objective(scores_b1, use_max_margin=mm, c=c))
        want = _ref_max_margin(scores_b1, c) if mm else _ref_bce(scores_b1)
        assert jnp.allclose(got, want, atol=1e-5, rtol=1e-5)

    # --- 1-D ragged case, multi-block path forced via tiny block budget ---
    scores_1d = jax.random.normal(jax.random.PRNGKey(2), (2000,), dtype=jnp.float32)
    small_budget = 8 * _LANES * 4          # -> tm=8, grid_m=2, masked tail
    for mm in (True, False):
        got = jax.block_until_ready(
            binary_score_objective(scores_1d, use_max_margin=mm, c=c,
                                   block_bytes=small_budget))
        want = _ref_max_margin(scores_1d, c) if mm else _ref_bce(scores_1d)
        assert jnp.allclose(got, want, atol=1e-5, rtol=1e-5)

    # --- 3-D input collapses cleanly ---
    scores_3d = jax.random.normal(jax.random.PRNGKey(3), (2, 4, 16), dtype=jnp.float32)
    got = jax.block_until_ready(
        binary_score_objective(scores_3d, use_max_margin=True, c=c))
    assert jnp.allclose(got, _ref_max_margin(scores_3d, c), atol=1e-5, rtol=1e-5)

    print("KERNEL_OK")
</pallas_src>

<mosaic_0001>
module attributes {stable_mosaic.version = 11 : i64} {
  func.func @_loss_kernel(%arg0: i32, %arg1: memref<32x128xf32, #tpu.memory_space<vmem>>, %arg2: memref<1x1xf32, #tpu.memory_space<smem>>) attributes {dimension_semantics = [#tpu.dimension_semantics<arbitrary>], iteration_bounds = array<i64: 1>, scalar_prefetch = 0 : i64, scratch_operands = 0 : i64, tpu.core_type = #tpu.core_type<tc>, window_params = [{transform_indices = @transform_0, window_bounds = array<i64: 32, 128>}, {transform_indices = @transform_1, window_bounds = array<i64: 1, 1>}]} {
    %c0 = arith.constant 0 : index
    %c0_0 = arith.constant 0 : index
    %0 = vector.load %arg1[%c0, %c0_0] : memref<32x128xf32, #tpu.memory_space<vmem>>, vector<32x128xf32>
    %cst = arith.constant 1.000000e+00 : f32
    %1 = vector.broadcast %cst : f32 to vector<32x128xf32>
    %2 = arith.addf %0, %1 : vector<32x128xf32>
    %cst_1 = arith.constant 0.000000e+00 : f32
    %3 = vector.broadcast %cst_1 : f32 to vector<32x128xf32>
    %4 = arith.maximumf %2, %3 : vector<32x128xf32>
    %5 = vector.shape_cast %4 : vector<32x128xf32> to vector<1x32x128xf32>
    %cst_2 = arith.constant dense<0.000000e+00> : vector<1xf32>
    %6 = vector.multi_reduction <add>, %5, %cst_2 [1, 2] : vector<1x32x128xf32> to vector<1xf32>
    %7 = vector.shape_cast %6 : vector<1xf32> to vector<1x1x1xf32>
    %8 = vector.extract %7[0, 0, 0] : f32 from vector<1x1x1xf32>
    %cst_3 = arith.constant -2.44140625E-4 : f32
    %9 = arith.mulf %cst_3, %8 : f32
    %c0_4 = arith.constant 0 : index
    %c0_5 = arith.constant 0 : index
    %10 = memref.load %arg2[%c0_4, %c0_5] : memref<1x1xf32, #tpu.memory_space<smem>>
    memref.store %9, %arg2[%c0_4, %c0_5] : memref<1x1xf32, #tpu.memory_space<smem>>
    return
  }
  func.func @transform_0(%arg0: i32) -> (i32, i32) {
    %c0_i32 = arith.constant 0 : i32
    %c0_i32_0 = arith.constant 0 : i32
    return %arg0, %c0_i32 : i32, i32
  }
  func.func @transform_1(%arg0: i32) -> (i32, i32) {
    %c0_i32 = arith.constant 0 : i32
    %c0_i32_0 = arith.constant 0 : i32
    %c0_i32_1 = arith.constant 0 : i32
    return %c0_i32, %c0_i32_0 : i32, i32
  }
}

</mosaic_0001>

<llo_original>
// kernel: tpu_custom_call.1
$region0: #{tpu_custom_call.1}
  #allocation0 [shape = 'u32[]', space=smem, size = 0x4, offset = 0x4, fixed_abs, tag = 'smem constant byte address 0x4 - core index']
  #allocation1 [shape = 'u32[144,128]{1,0:T(1,128)}', space=vmem, size = 0x12000, scoped, tag = 'internal scratch']
  %s0 = inlined_call_operand.hbm [shape: f32[32,128], index: 0, kind: input, shape index: {}]
  %s1 = inlined_call_operand.hbm [shape: f32[1,1], index: 1, kind: output, shape index: {}]
  %s2 = sld [smem:[#allocation0]]
  $region18: #{tpu_custom_call.1} parent=0
    _
  %s4 = ssub.s32 1, %s2
  %s5 = scalar_select 0, %s4, %s2
  $region1: #{tpu_custom_call.1} parent=0
    #allocation2 [shape = 'u8[16384]{0}', space=vmem, size = 0x4000, scoped, tag = 'input window, operand 0, single buffered']
    #allocation3 [shape = 's32[1]{0}', space=sflag, size = 0x4, scoped, tag = 'scoped memory for tpu_custom_call.1']
    #allocation4 [shape = 's32[1]{0}', space=sflag, size = 0x4, scoped, tag = 'scoped memory for tpu_custom_call.1']
    #allocation5 [shape = 'u8[512]{0}', space=smem, size = 0x200, scoped, tag = 'output window, operand 0, single buffered']
    %6 = vsyncpa [#allocation3], 0
    %7 = vsyncpa [#allocation4], 0
    // Predicated region
    $region2: #{tpu_custom_call.1} parent=1 // pred_check
      _
    $region3: #{tpu_custom_call.1} parent=1 // pred_check_branch
      %9 = sbr.rel (0) target = $region5
    $region4: #{tpu_custom_call.1} parent=1 // pred_region
      %s11 = ssub.s32 512, 512
      %12 = vsyncadd [#allocation3], %s11
      %s13 = sshll.u32 [#allocation2], 4
      %s14 = int_to_ptr.vmem [resolvable:$true] %s13
      %19 = dma.hbm_to_vmem [thread:$0]  %s0, 512, %s14, [#allocation3], 128, 128, 8
    $region5: #{tpu_custom_call.1} parent=1 // pred_fallthru
      _
    // Predicated region
    $region6: #{tpu_custom_call.1} parent=1 // pred_check
      _
    $region7: #{tpu_custom_call.1} parent=1 // pred_check_branch
      %21 = sbr.rel (0) target = $region9
    $region8: #{tpu_custom_call.1} parent=1 // pred_region
      %22 = dma.done [#allocation3], 512
    $region9: #{tpu_custom_call.1} parent=1 // pred_fallthru
      _
    %v23 = vld [vmem:[#allocation2] sm:$0xff]
    %v24 = vld [vmem:[#allocation2 + $0x8] sm:$0xff]
    %v25 = vld [vmem:[#allocation2 + $0x10] sm:$0xff]
    %v26 = vld [vmem:[#allocation2 + $0x18] sm:$0xff]
    %v27 = vadd.f32 %v23, 1.0
    %v28 = vadd.f32 %v24, 1.0
    %v29 = vadd.f32 %v25, 1.0
    %v30 = vadd.f32 %v26, 1.0
    %v31 = vmax.f32 %v27, 0.0
    %v32 = vmax.f32 %v28, 0.0
    %v33 = vmax.f32 %v29, 0.0
    %v34 = vmax.f32 %v30, 0.0
    %v35 = vadd.f32 %v31, %v32
    %v36 = vadd.f32 %v35, %v33
    %v37 = vadd.f32 %v36, %v34
    %38 = vadd.xlane.f32.xlu0 %v37
    %v39 = vpop.xlane.xlu0 %38
    %v40 = vrot.slane %v39, 4
    %v41 = vadd.f32 %v39, %v40
    %v42 = vrot.slane %v41, 2
    %v43 = vadd.f32 %v41, %v42
    %v44 = vrot.slane %v43, 1
    %v45 = vadd.f32 %v43, %v44
    %s46 = vtos %v45
    %s47 = smul.f32 %s46, -0.00024414063
    %s48 = scalar_lea.smem [#allocation5], 0
    %49 = sst [smem:[%s48]] %s47
    // Predicated region
    $region10: #{tpu_custom_call.1} parent=1 // pred_check
      _
    $region11: #{tpu_custom_call.1} parent=1 // pred_check_branch
      %51 = sbr.rel (0) target = $region13
    $region12: #{tpu_custom_call.1} parent=1 // pred_region
      %s53 = ssub.s32 16, 16
      %54 = vsyncadd [#allocation4], %s53
      %57 = dma.smem_to_hbm [#allocation5], 16, %s1, [#allocation4]
    $region13: #{tpu_custom_call.1} parent=1 // pred_fallthru
      _
    // Predicated region
    $region14: #{tpu_custom_call.1} parent=1 // pred_check
      _
    $region15: #{tpu_custom_call.1} parent=1 // pred_check_branch
      %59 = sbr.rel (0) target = $region17
    $region16: #{tpu_custom_call.1} parent=1 // pred_region
      %60 = dma.done [#allocation4], 16
    $region17: #{tpu_custom_call.1} parent=1 // pred_fallthru
      _
    %61 = sfence
    %62 = vsyncpa [#allocation3], 1
    %63 = vsyncpa [#allocation4], 1

</llo_original>
